<compile_context>
chip_gen: v5e
topology: v5e:2x2
jax: 0.10.0
libtpu: 0.0.40
codegen_flags: <defaults>
</compile_context>

<pallas_src>
import functools

import jax
import jax.numpy as jnp
from jax.experimental import pallas as pl
from jax.experimental.pallas import tpu as pltpu


# --------------------------------------------------------------------------- #
# Small-BS path: whole problem in one VMEM tile, no grid.
# --------------------------------------------------------------------------- #
def _ual_single_kernel(sims_ref, sim_k_ref, out_ref, *, inv_tau):
    sims = sims_ref[...].astype(jnp.float32)      # (BS, BS)
    sim_k = sim_k_ref[...].astype(jnp.float32)    # (BS, K)
    bs = sims.shape[0]
    k = sim_k.shape[1]
    inv_bs = jnp.float32(1.0 / bs)                # fuse mean-divides into const muls

    # soft_label row sums: full row sum (XLU) minus the diagonal entry.
    row = jax.lax.broadcasted_iota(jnp.int32, sims.shape, 0)
    col = jax.lax.broadcasted_iota(jnp.int32, sims.shape, 1)
    row_sum = jnp.sum(sims, axis=1, keepdims=True)                       # (BS, 1)
    diag = jnp.sum(jnp.where(row == col, sims, 0.0), axis=1, keepdims=True)
    sl = (row_sum - diag) * inv_bs                                       # (BS, 1)

    # Evidence -> uncertainty: 1 - U = 1 - K / (K + sum_j exp(sim_K / tau)).
    e = jnp.exp(sim_k * jnp.float32(inv_tau))                            # EUP
    s = jnp.sum(e, axis=1, keepdims=True) + jnp.float32(k)               # (BS, 1)
    omu = 1.0 - jnp.float32(k) / s                                       # (BS, 1)

    # Five sufficient statistics -> scalar epilogue (no scale*sl broadcast pass).
    s1 = jnp.sum(omu)
    s2 = jnp.sum(sl)
    s3 = jnp.sum(omu * omu)
    s4 = jnp.sum(sl * sl)
    s5 = jnp.sum(omu * sl)
    scale = s1 / s2                               # == mean(omu)/mean(sl)
    loss = (s3 - 2.0 * scale * s5 + scale * scale * s4) * inv_bs

    # Full-vreg (8,128) unmasked store; scalar read back in the wrapper.
    out_ref[...] = jnp.full(out_ref.shape, loss, dtype=out_ref.dtype)


# --------------------------------------------------------------------------- #
# Large-BS path: 1-D grid over row tiles, streaming sufficient statistics.
# --------------------------------------------------------------------------- #
def _ual_tiled_kernel(sims_ref, diag_ref, sim_k_ref, out_ref,
                      a1_ref, a2_ref, a3_ref, a4_ref, a5_ref, *, inv_tau):
    i = pl.program_id(0)
    last = pl.num_programs(0) - 1

    @pl.when(i == 0)
    def _():
        a1_ref[...] = jnp.zeros_like(a1_ref)
        a2_ref[...] = jnp.zeros_like(a2_ref)
        a3_ref[...] = jnp.zeros_like(a3_ref)
        a4_ref[...] = jnp.zeros_like(a4_ref)
        a5_ref[...] = jnp.zeros_like(a5_ref)
        out_ref[...] = jnp.zeros_like(out_ref)

    sims = sims_ref[...].astype(jnp.float32)      # (TM, BS)  full row stripe
    dblk = diag_ref[...].astype(jnp.float32)      # (TM, TM)  diagonal sub-block
    sim_k = sim_k_ref[...].astype(jnp.float32)    # (TM, K)
    bs = sims.shape[1]
    k = sim_k.shape[1]
    inv_bs = jnp.float32(1.0 / bs)

    # Plain XLU row-sum over the bulk; masked work only on the TMxTM diag block.
    row_sum = jnp.sum(sims, axis=1, keepdims=True)                       # (TM, 1)
    r = jax.lax.broadcasted_iota(jnp.int32, dblk.shape, 0)
    c = jax.lax.broadcasted_iota(jnp.int32, dblk.shape, 1)
    diag = jnp.sum(jnp.where(r == c, dblk, 0.0), axis=1, keepdims=True)  # (TM, 1)
    sl = (row_sum - diag) * inv_bs                                       # (TM, 1)

    e = jnp.exp(sim_k * jnp.float32(inv_tau))                            # EUP
    s = jnp.sum(e, axis=1, keepdims=True) + jnp.float32(k)               # (TM, 1)
    omu = 1.0 - jnp.float32(k) / s                                       # (TM, 1)

    # Accumulate the five scalar statistics across row tiles.
    a1_ref[...] = a1_ref[...] + jnp.sum(omu)
    a2_ref[...] = a2_ref[...] + jnp.sum(sl)
    a3_ref[...] = a3_ref[...] + jnp.sum(omu * omu)
    a4_ref[...] = a4_ref[...] + jnp.sum(sl * sl)
    a5_ref[...] = a5_ref[...] + jnp.sum(omu * sl)

    @pl.when(i == last)
    def _():
        s1 = a1_ref[0, 0]
        s2 = a2_ref[0, 0]
        s3 = a3_ref[0, 0]
        s4 = a4_ref[0, 0]
        s5 = a5_ref[0, 0]
        scale = s1 / s2
        loss = (s3 - 2.0 * scale * s5 + scale * scale * s4) * inv_bs
        out_ref[...] = jnp.full(out_ref.shape, loss, dtype=out_ref.dtype)


# --------------------------------------------------------------------------- #
# Wrapper
# --------------------------------------------------------------------------- #
def uncertainty_aware_loss(sims, sim_k, tau=5.0, lambda_=5e-05, block_rows=None):
    """Pallas TPU UncertaintyAwareLoss.forward.

    sims:  (BS, BS) similarity matrix (any float dtype; upcast to f32 in-kernel).
    sim_k: (BS, K)  per-sample similarities.
    block_rows: None -> heuristic; 0 -> force single-tile; N -> force row tiles
                of N rows (N must be a multiple of 128 and divide BS).
    Returns scalar float32 loss.  (`lambda_` is unused, matching the torch module.)
    """
    del lambda_  # unused by the torch forward as well
    bs = sims.shape[0]
    k = sim_k.shape[1]
    assert sims.ndim == 2 and sims.shape[1] == bs, "sims must be (BS, BS)"
    assert sim_k.ndim == 2 and sim_k.shape[0] == bs, "sim_K must be (BS, K)"
    inv_tau = 1.0 / float(tau)

    if block_rows is None:
        # Heuristic tile trigger.  Scoped-VMEM defaults: ~16 MiB (v5e),
        # ~32 MiB (v6e), ~32 MiB scoped / only 64 MiB physical (v7x), so the
        # single-tile path is kept only while sims (+ sim_K) is comfortably
        # small; otherwise stream row tiles (block_shape last dims must be
        # multiples of 128, hence the bs % 128 gate).
        if bs <= 1024 or bs % 128 != 0:
            block_rows = 0
        else:
            block_rows = 0
            for cand in (512, 256, 128):
                if bs % cand == 0:
                    block_rows = cand
                    break

    if block_rows == 0 or block_rows >= bs:
        # ---- single-tile, grid-free path (small BS) ----
        kernel = functools.partial(_ual_single_kernel, inv_tau=inv_tau)
        out = pl.pallas_call(
            kernel,
            out_shape=jax.ShapeDtypeStruct((8, 128), jnp.float32),
            in_specs=[
                pl.BlockSpec(memory_space=pltpu.MemorySpace.VMEM),
                pl.BlockSpec(memory_space=pltpu.MemorySpace.VMEM),
            ],
            out_specs=pl.BlockSpec(memory_space=pltpu.MemorySpace.VMEM),
        )(sims, sim_k)
        return out[0, 0]

    # ---- tiled streaming path (large BS) ----
    tm = int(block_rows)
    assert bs % tm == 0, "block_rows must divide BS"
    assert tm % 128 == 0, "block_rows must be a multiple of 128 (diag sub-block)"
    n_tiles = bs // tm

    kernel = functools.partial(_ual_tiled_kernel, inv_tau=inv_tau)
    out = pl.pallas_call(
        kernel,
        out_shape=jax.ShapeDtypeStruct((8, 128), jnp.float32),
        grid_spec=pltpu.PrefetchScalarGridSpec(
            num_scalar_prefetch=0,
            grid=(n_tiles,),
            in_specs=[
                # Full-width row stripe of sims.
                pl.BlockSpec((tm, bs), lambda i: (i, 0)),
                # (TM, TM) sub-block of sims containing this stripe's diagonal.
                pl.BlockSpec((tm, tm), lambda i: (i, i)),
                # Matching rows of sim_K.
                pl.BlockSpec((tm, k), lambda i: (i, 0)),
            ],
            out_specs=pl.BlockSpec((8, 128), lambda i: (0, 0)),
            scratch_shapes=[pltpu.VMEM((1, 1), jnp.float32)] * 5,
        ),
        compiler_params=pltpu.CompilerParams(
            dimension_semantics=("arbitrary",),
        ),
    )(sims, sims, sim_k)
    return out[0, 0]


def uncertainty_aware_loss_ref(sims, sim_k, tau=5.0):
    """Pure-JAX reference (mirrors the torch forward, upcast to f32)."""
    bs = sims.shape[0]
    k = sim_k.shape[1]
    sims = sims.astype(jnp.float32)
    sim_k = sim_k.astype(jnp.float32)
    mask = 1.0 - jnp.eye(bs, dtype=jnp.float32)
    soft_label = jnp.mean(sims * mask, axis=1, keepdims=True)
    e = jnp.exp(sim_k / tau)
    s = jnp.sum(e + 1.0, axis=1, keepdims=True)
    u = k / s
    scale = jnp.mean(1.0 - u) / jnp.mean(soft_label)
    return jnp.mean((1.0 - u - scale * soft_label) ** 2)


if __name__ == "__main__":
    key = jax.random.PRNGKey(0)
    k1, k2, k3, k4 = jax.random.split(key, 4)

    # ---- small single-tile path (f32) ----
    BS, K = 8, 32
    # Similarities in [0, 1) keep soft_label.mean() (a divisor in `scale`)
    # comfortably away from zero, as with cosine-similarity inputs.
    sims = jax.random.uniform(k1, (BS, BS), dtype=jnp.float32)
    sim_k = jax.random.normal(k2, (BS, K), dtype=jnp.float32)
    loss = jax.block_until_ready(uncertainty_aware_loss(sims, sim_k, tau=5.0))
    ref = uncertainty_aware_loss_ref(sims, sim_k, tau=5.0)
    assert jnp.allclose(loss, ref, rtol=1e-4, atol=1e-6), (loss, ref)

    # ---- same path with bf16 inputs kept native across the call boundary ----
    sims_bf = sims.astype(jnp.bfloat16)
    simk_bf = sim_k.astype(jnp.bfloat16)
    loss_bf = jax.block_until_ready(uncertainty_aware_loss(sims_bf, simk_bf, tau=5.0))
    ref_bf = uncertainty_aware_loss_ref(sims_bf, simk_bf, tau=5.0)
    assert jnp.allclose(loss_bf, ref_bf, rtol=1e-3, atol=1e-6), (loss_bf, ref_bf)

    # ---- tiled streaming path (forced small tiles to exercise the grid) ----
    BS2, K2 = 256, 32
    sims2 = jax.random.uniform(k3, (BS2, BS2), dtype=jnp.float32)
    sim_k2 = jax.random.normal(k4, (BS2, K2), dtype=jnp.float32) * 3.0
    loss2 = jax.block_until_ready(
        uncertainty_aware_loss(sims2, sim_k2, tau=5.0, block_rows=128))
    ref2 = uncertainty_aware_loss_ref(sims2, sim_k2, tau=5.0)
    # Looser rtol: the expanded sufficient-statistics form trades a little f32
    # cancellation headroom for single-pass streaming.
    assert jnp.allclose(loss2, ref2, rtol=2e-3, atol=1e-6), (loss2, ref2)

    print("KERNEL_OK")
</pallas_src>

<mosaic_0001>
module attributes {stable_mosaic.version = 11 : i64} {
  func.func @_ual_single_kernel(%arg0: memref<8x8xf32, #tpu.memory_space<vmem>>, %arg1: memref<8x32xf32, #tpu.memory_space<vmem>>, %arg2: memref<8x128xf32, #tpu.memory_space<vmem>>) attributes {dimension_semantics = [], scalar_prefetch = 0 : i64, scratch_operands = 0 : i64, tpu.core_type = #tpu.core_type<tc>} {
    %c0 = arith.constant 0 : index
    %c0_0 = arith.constant 0 : index
    %0 = vector.load %arg0[%c0, %c0_0] : memref<8x8xf32, #tpu.memory_space<vmem>>, vector<8x8xf32>
    %c0_1 = arith.constant 0 : index
    %c0_2 = arith.constant 0 : index
    %1 = vector.load %arg1[%c0_1, %c0_2] : memref<8x32xf32, #tpu.memory_space<vmem>>, vector<8x32xf32>
    %2 = tpu.iota {dimensions = array<i32: 0>} : vector<8x8xi32>
    %3 = tpu.iota {dimensions = array<i32: 1>} : vector<8x8xi32>
    %cst = arith.constant dense<0.000000e+00> : vector<8xf32>
    %4 = vector.multi_reduction <add>, %0, %cst [1] : vector<8x8xf32> to vector<8xf32>
    %5 = vector.shape_cast %4 : vector<8xf32> to vector<8x1xf32>
    %6 = arith.cmpi eq, %2, %3 : vector<8x8xi32>
    %cst_3 = arith.constant 0.000000e+00 : f32
    %7 = vector.broadcast %cst_3 : f32 to vector<8x8xf32>
    %8 = arith.select %6, %0, %7 : vector<8x8xi1>, vector<8x8xf32>
    %cst_4 = arith.constant dense<0.000000e+00> : vector<8xf32>
    %9 = vector.multi_reduction <add>, %8, %cst_4 [1] : vector<8x8xf32> to vector<8xf32>
    %10 = vector.shape_cast %9 : vector<8xf32> to vector<8x1xf32>
    %11 = arith.subf %5, %10 : vector<8x1xf32>
    %cst_5 = arith.constant 1.250000e-01 : f32
    %12 = vector.broadcast %cst_5 : f32 to vector<8x1xf32>
    %13 = arith.mulf %11, %12 : vector<8x1xf32>
    %cst_6 = arith.constant 2.000000e-01 : f32
    %14 = vector.broadcast %cst_6 : f32 to vector<8x32xf32>
    %15 = arith.mulf %1, %14 : vector<8x32xf32>
    %16 = math.exp %15 : vector<8x32xf32>
    %cst_7 = arith.constant dense<0.000000e+00> : vector<8xf32>
    %17 = vector.multi_reduction <add>, %16, %cst_7 [1] : vector<8x32xf32> to vector<8xf32>
    %18 = vector.shape_cast %17 : vector<8xf32> to vector<8x1xf32>
    %cst_8 = arith.constant 3.200000e+01 : f32
    %19 = vector.broadcast %cst_8 : f32 to vector<8x1xf32>
    %20 = arith.addf %18, %19 : vector<8x1xf32>
    %cst_9 = arith.constant 3.200000e+01 : f32
    %21 = vector.broadcast %cst_9 : f32 to vector<8x1xf32>
    %22 = arith.divf %21, %20 : vector<8x1xf32>
    %cst_10 = arith.constant 1.000000e+00 : f32
    %23 = vector.broadcast %cst_10 : f32 to vector<8x1xf32>
    %24 = arith.subf %23, %22 : vector<8x1xf32>
    %25 = vector.shape_cast %24 : vector<8x1xf32> to vector<1x8x1xf32>
    %cst_11 = arith.constant dense<0.000000e+00> : vector<1xf32>
    %26 = vector.multi_reduction <add>, %25, %cst_11 [1, 2] : vector<1x8x1xf32> to vector<1xf32>
    %27 = vector.shape_cast %26 : vector<1xf32> to vector<1x1x1xf32>
    %28 = vector.extract %27[0, 0, 0] : f32 from vector<1x1x1xf32>
    %29 = vector.shape_cast %13 : vector<8x1xf32> to vector<1x8x1xf32>
    %cst_12 = arith.constant dense<0.000000e+00> : vector<1xf32>
    %30 = vector.multi_reduction <add>, %29, %cst_12 [1, 2] : vector<1x8x1xf32> to vector<1xf32>
    %31 = vector.shape_cast %30 : vector<1xf32> to vector<1x1x1xf32>
    %32 = vector.extract %31[0, 0, 0] : f32 from vector<1x1x1xf32>
    %33 = arith.mulf %24, %24 : vector<8x1xf32>
    %34 = vector.shape_cast %33 : vector<8x1xf32> to vector<1x8x1xf32>
    %cst_13 = arith.constant dense<0.000000e+00> : vector<1xf32>
    %35 = vector.multi_reduction <add>, %34, %cst_13 [1, 2] : vector<1x8x1xf32> to vector<1xf32>
    %36 = vector.shape_cast %35 : vector<1xf32> to vector<1x1x1xf32>
    %37 = vector.extract %36[0, 0, 0] : f32 from vector<1x1x1xf32>
    %38 = arith.mulf %13, %13 : vector<8x1xf32>
    %39 = vector.shape_cast %38 : vector<8x1xf32> to vector<1x8x1xf32>
    %cst_14 = arith.constant dense<0.000000e+00> : vector<1xf32>
    %40 = vector.multi_reduction <add>, %39, %cst_14 [1, 2] : vector<1x8x1xf32> to vector<1xf32>
    %41 = vector.shape_cast %40 : vector<1xf32> to vector<1x1x1xf32>
    %42 = vector.extract %41[0, 0, 0] : f32 from vector<1x1x1xf32>
    %43 = arith.mulf %24, %13 : vector<8x1xf32>
    %44 = vector.shape_cast %43 : vector<8x1xf32> to vector<1x8x1xf32>
    %cst_15 = arith.constant dense<0.000000e+00> : vector<1xf32>
    %45 = vector.multi_reduction <add>, %44, %cst_15 [1, 2] : vector<1x8x1xf32> to vector<1xf32>
    %46 = vector.shape_cast %45 : vector<1xf32> to vector<1x1x1xf32>
    %47 = vector.extract %46[0, 0, 0] : f32 from vector<1x1x1xf32>
    %48 = arith.divf %28, %32 : f32
    %cst_16 = arith.constant 2.000000e+00 : f32
    %49 = arith.mulf %cst_16, %48 : f32
    %50 = arith.mulf %49, %47 : f32
    %51 = arith.subf %37, %50 : f32
    %52 = arith.mulf %48, %48 : f32
    %53 = arith.mulf %52, %42 : f32
    %54 = arith.addf %51, %53 : f32
    %cst_17 = arith.constant 1.250000e-01 : f32
    %55 = arith.mulf %54, %cst_17 : f32
    %56 = vector.broadcast %55 : f32 to vector<8x128xf32>
    %c0_18 = arith.constant 0 : index
    %c0_19 = arith.constant 0 : index
    %57 = vector.load %arg2[%c0_18, %c0_19] : memref<8x128xf32, #tpu.memory_space<vmem>>, vector<8x128xf32>
    tpu.vector_store %arg2[%c0_18, %c0_19], %56 {strides = array<i32>} : memref<8x128xf32, #tpu.memory_space<vmem>>, vector<8x128xf32>,
    return
  }
}

</mosaic_0001>

<llo_original>
// kernel: tpu_custom_call.1
$region0: #{tpu_custom_call.1}
  #allocation0 [shape = 'u32[]', space=smem, size = 0x4, offset = 0x4, fixed_abs, tag = 'smem constant byte address 0x4 - core index']
  #allocation1 [shape = 'u32[72,128]{1,0:T(1,128)}', space=vmem, size = 0x9000, scoped, tag = 'internal scratch']
  %s0 = inlined_call_operand.hbm [shape: f32[8,8], index: 0, kind: input, shape index: {}]
  %s1 = inlined_call_operand.hbm [shape: f32[8,32], index: 1, kind: input, shape index: {}]
  %s2 = inlined_call_operand.hbm [shape: f32[8,128], index: 2, kind: output, shape index: {}]
  %s3 = sld [smem:[#allocation0]]
  $region26: #{tpu_custom_call.1} parent=0
    _
  %s5 = ssub.s32 1, %s3
  %s6 = scalar_select 0, %s5, %s3
  $region1: #{tpu_custom_call.1} parent=0
    #allocation2 [shape = 'u8[4096]{0}', space=vmem, size = 0x1000, scoped, tag = 'input window, operand 0, single buffered']
    #allocation3 [shape = 's32[1]{0}', space=sflag, size = 0x4, scoped, tag = 'scoped memory for tpu_custom_call.1']
    #allocation4 [shape = 's32[1]{0}', space=sflag, size = 0x4, scoped, tag = 'scoped memory for tpu_custom_call.1']
    #allocation5 [shape = 'u8[4096]{0}', space=vmem, size = 0x1000, scoped, tag = 'input window, operand 1, single buffered']
    #allocation6 [shape = 's32[1]{0}', space=sflag, size = 0x4, scoped, tag = 'scoped memory for tpu_custom_call.1']
    #allocation7 [shape = 'u8[4096]{0}', space=vmem, size = 0x1000, scoped, tag = 'output window, operand 0, single buffered']
    %7 = vsyncpa [#allocation3], 0
    %8 = vsyncpa [#allocation6], 0
    %9 = vsyncpa [#allocation4], 0
    // Predicated region
    $region2: #{tpu_custom_call.1} parent=1 // pred_check
      _
    $region3: #{tpu_custom_call.1} parent=1 // pred_check_branch
      %11 = sbr.rel (0) target = $region5
    $region4: #{tpu_custom_call.1} parent=1 // pred_region
      %13 = vsyncadd [#allocation3], 0
      %s15 = sshll.u32 %s0, 4
      %s16 = int_to_ptr.hbm [resolvable:$true] %s15
      %s17 = sshll.u32 [#allocation2], 4
      %s18 = int_to_ptr.vmem [resolvable:$true] %s17
      %20 = dma.hbm_to_vmem [thread:$0]  %s16, 128, %s18, [#allocation3]
    $region5: #{tpu_custom_call.1} parent=1 // pred_fallthru
      _
    // Predicated region
    $region6: #{tpu_custom_call.1} parent=1 // pred_check
      _
    $region7: #{tpu_custom_call.1} parent=1 // pred_check_branch
      %22 = sbr.rel (0) target = $region9
    $region8: #{tpu_custom_call.1} parent=1 // pred_region
      %24 = vsyncadd [#allocation6], 0
      %s26 = sshll.u32 %s1, 4
      %s27 = int_to_ptr.hbm [resolvable:$true] %s26
      %s28 = sshll.u32 [#allocation5], 4
      %s29 = int_to_ptr.vmem [resolvable:$true] %s28
      %31 = dma.hbm_to_vmem [thread:$0]  %s27, 128, %s29, [#allocation6]
    $region9: #{tpu_custom_call.1} parent=1 // pred_fallthru
      _
    // Predicated region
    $region10: #{tpu_custom_call.1} parent=1 // pred_check
      _
    $region11: #{tpu_custom_call.1} parent=1 // pred_check_branch
      %33 = sbr.rel (0) target = $region13
    $region12: #{tpu_custom_call.1} parent=1 // pred_region
      %35 = dma.done [#allocation3], 128
    $region13: #{tpu_custom_call.1} parent=1 // pred_fallthru
      _
    // Predicated region
    $region14: #{tpu_custom_call.1} parent=1 // pred_check
      _
    $region15: #{tpu_custom_call.1} parent=1 // pred_check_branch
      %37 = sbr.rel (0) target = $region17
    $region16: #{tpu_custom_call.1} parent=1 // pred_region
      %39 = dma.done [#allocation6], 128
    $region17: #{tpu_custom_call.1} parent=1 // pred_fallthru
      _
    %v40 = vld [vmem:[#allocation2] sm:$0xff]
    %v41 = vld [vmem:[#allocation5] sm:$0xff]
    %v42 = vlaneseq
    %v43 = vshrl.u32 %v42, 7
    %v44 = vlaneseq
    %v45 = vand.u32 %v44, 127
    %vm46 = vcmask 64512
    %v47 = vsel %vm46, %v40, 0.0
    %48 = vadd.xlane.f32.xlu0 %v47
    %v49 = vpop.xlane.xlu0 %48
    %vm50 = vcmp.eq.s32.totalorder %v43, %v45
    %v51 = vsel %vm50, %v40, 0.0
    %v52 = vsel %vm46, %v51, 0.0
    %53 = vadd.xlane.f32.xlu0 %v52
    %v54 = vpop.xlane.xlu0 %53
    %v55 = vsub.f32 %v49, %v54
    %v56 = vmul.f32 %v55, 0.125
    %v57 = vmul.f32 %v41, 0.2
    %v58 = vmul.f32 %v57, 1.442695
    %v59 = vpow.pop %v58
    %vm60 = vcmask 261120
    %v61 = vsel %vm60, %v59, 0.0
    %62 = vadd.xlane.f32.xlu0 %v61
    %v63 = vpop.xlane.xlu0 %62
    %v64 = vadd.f32 %v63, 32.0
    %v65 = vrcp.pop %v64
    %v66 = vmul.f32 %v64, %v65
    %v67 = vsub.f32 1.0, %v66
    %v68 = vmul.f32 %v65, %v67
    %v69 = vadd.f32 %v65, %v68
    %vm70 = vweird.f32 %v64
    %vm71 = vweird.f32 %v65
    %vm72 = vmor %vm70, %vm71
    %v73 = vsel %vm72, %v65, %v69
    %v74 = vand.u32 2147483647, %v64
    %vm75 = vcmp.eq.f32.partialorder %v74, 8.507059e+37
    %v76 = vand.u32 %v64, 2147483648
    %v77 = vor.u32 1.1754944e-38, %v76
    %v78 = vsel %vm75, %v77, %v73
    %v79 = vmul.f32 32.0, %v78
    %v80 = vsub.f32 1.0, %v79
    %vm81 = vcmask 7168
    %v82 = vsel %vm81, %v80, 0.0
    %83 = vadd.xlane.f32.xlu0 %v82
    %v84 = vpop.xlane.xlu0 %83
    %v85 = vrot.slane %v84, 4
    %v86 = vadd.f32 %v84, %v85
    %v87 = vrot.slane %v86, 2
    %v88 = vadd.f32 %v86, %v87
    %v89 = vrot.slane %v88, 1
    %v90 = vadd.f32 %v88, %v89
    %s91 = vtos %v90
    %v92 = vsel %vm81, %v56, 0.0
    %93 = vadd.xlane.f32.xlu0 %v92
    %v94 = vpop.xlane.xlu0 %93
    %v95 = vrot.slane %v94, 4
    %v96 = vadd.f32 %v94, %v95
    %v97 = vrot.slane %v96, 2
    %v98 = vadd.f32 %v96, %v97
    %v99 = vrot.slane %v98, 1
    %v100 = vadd.f32 %v98, %v99
    %s101 = vtos %v100
    %v102 = vmul.f32 %v80, %v80
    %v103 = vsel %vm81, %v102, 0.0
    %104 = vadd.xlane.f32.xlu0 %v103
    %v105 = vpop.xlane.xlu0 %104
    %v106 = vrot.slane %v105, 4
    %v107 = vadd.f32 %v105, %v106
    %v108 = vrot.slane %v107, 2
    %v109 = vadd.f32 %v107, %v108
    %v110 = vrot.slane %v109, 1
    %v111 = vadd.f32 %v109, %v110
    %s112 = vtos %v111
    %v113 = vmul.f32 %v56, %v56
    %v114 = vsel %vm81, %v113, 0.0
    %115 = vadd.xlane.f32.xlu0 %v114
    %v116 = vpop.xlane.xlu0 %115
    %v117 = vrot.slane %v116, 4
    %v118 = vadd.f32 %v116, %v117
    %v119 = vrot.slane %v118, 2
    %v120 = vadd.f32 %v118, %v119
    %v121 = vrot.slane %v120, 1
    %v122 = vadd.f32 %v120, %v121
    %s123 = vtos %v122
    %v124 = vmul.f32 %v80, %v56
    %v125 = vsel %vm81, %v124, 0.0
    %126 = vadd.xlane.f32.xlu0 %v125
    %v127 = vpop.xlane.xlu0 %126
    %v128 = vrot.slane %v127, 4
    %v129 = vadd.f32 %v127, %v128
    %v130 = vrot.slane %v129, 2
    %v131 = vadd.f32 %v129, %v130
    %v132 = vrot.slane %v131, 1
    %v133 = vadd.f32 %v131, %v132
    %s134 = vtos %v133
    %v135 = vstv %s101
    %v136 = vrcp.pop %v135
    %v137 = vmul.f32 %v135, %v136
    %v138 = vsub.f32 1.0, %v137
    %v139 = vmul.f32 %v136, %v138
    %v140 = vadd.f32 %v136, %v139
    %vm141 = vweird.f32 %v135
    %vm142 = vweird.f32 %v136
    %vm143 = vmor %vm141, %vm142
    %v144 = vsel %vm143, %v136, %v140
    %v145 = vand.u32 2147483647, %v135
    %vm146 = vcmp.eq.f32.partialorder %v145, 8.507059e+37
    %v147 = vand.u32 %v135, 2147483648
    %v148 = vor.u32 1.1754944e-38, %v147
    %v149 = vsel %vm146, %v148, %v144
    %s150 = vtos %v149
    %s151 = smul.f32 %s91, %s150
    %s152 = smul.f32 %s151, 2.0
    %s153 = smul.f32 %s152, %s134
    %s154 = ssub.f32 %s112, %s153
    %s155 = smul.f32 %s151, %s151
    %s156 = smul.f32 %s155, %s123
    %s157 = sadd.f32 %s154, %s156
    %s158 = smul.f32 %s157, 0.125
    %v159 = vstv %s158
    %160 = vst [vmem:[#allocation7] sm:$0xff] %v159
    // Predicated region
    $region18: #{tpu_custom_call.1} parent=1 // pred_check
      _
    $region19: #{tpu_custom_call.1} parent=1 // pred_check_branch
      %162 = sbr.rel (0) target = $region21
    $region20: #{tpu_custom_call.1} parent=1 // pred_region
      %164 = vsyncadd [#allocation4], 0
      %s166 = sshll.u32 [#allocation7], 4
      %s167 = int_to_ptr.vmem [resolvable:$true] %s166
      %s168 = sshll.u32 %s2, 4
      %s169 = int_to_ptr.hbm [resolvable:$true] %s168
      %171 = dma.vmem_to_hbm [thread:$0]  %s167, 128, %s169, [#allocation4]
    $region21: #{tpu_custom_call.1} parent=1 // pred_fallthru
      _
    // Predicated region
    $region22: #{tpu_custom_call.1} parent=1 // pred_check
      _
    $region23: #{tpu_custom_call.1} parent=1 // pred_check_branch
      %173 = sbr.rel (0) target = $region25
    $region24: #{tpu_custom_call.1} parent=1 // pred_region
      %175 = dma.done [#allocation4], 128
    $region25: #{tpu_custom_call.1} parent=1 // pred_fallthru
      _
    %176 = vsyncpa [#allocation3], 1
    %177 = vsyncpa [#allocation6], 1
    %178 = vsyncpa [#allocation4], 1

</llo_original>
